<compile_context>
chip_gen: v5e
topology: v5e:2x2
jax: 0.10.0
libtpu: 0.0.40
codegen_flags: <defaults>
</compile_context>

<pallas_src>
import functools

import jax
import jax.numpy as jnp
from jax.experimental import pallas as pl
from jax.experimental.pallas import tpu as pltpu

N_IN = 11
N_H = 100
N_OUT = 11
BN_EPS = 1e-5
LANE = 128


def _round_up(n, m=LANE):
    return ((n + m - 1) // m) * m


def _sigmoid(x):
    return 1.0 / (1.0 + jnp.exp(-x))


def sae_kernel(x_ref, w1_ref, w2_ref, bn_ref, o_ref):
    """Whole forward pass in one VMEM-resident, lane-dense block.

    x_ref : (B, F_in_pad)          bf16, zero-padded input features
    w1_ref: (F_in_pad, H_pad)      bf16, fc1 weight (transposed, zero-padded)
    w2_ref: (H_pad, F_out_pad)     bf16, fc2 weight (transposed, zero-padded;
                                   padded K-rows are zero)
    bn_ref: (4, LANE)              f32, rows = [g1, be1, g2, be2] (zero-padded)
    o_ref : (B, F_out_pad)         f32 output (padded lanes sliced off outside)
    """
    x = x_ref[...]                       # bf16

    g1 = bn_ref[0:1, :]
    be1 = bn_ref[1:2, :]
    g2 = bn_ref[2:3, :]
    be2 = bn_ref[3:4, :]

    # ---- fc1: Linear (bias cancelled by BN) -> BatchNorm1d -> Sigmoid ----
    z1 = jnp.dot(x, w1_ref[...], preferred_element_type=jnp.float32)
    m1 = jnp.mean(z1, axis=0, keepdims=True)
    v1 = jnp.mean(z1 * z1, axis=0, keepdims=True) - m1 * m1   # biased variance
    scale1 = g1 * jax.lax.rsqrt(v1 + BN_EPS)                  # (1, H_pad)
    shift1 = be1 - m1 * scale1
    a1 = _sigmoid(z1 * scale1 + shift1)                       # single fused pass

    # ---- fc2: Linear (bias cancelled by BN) -> BatchNorm1d -> Sigmoid ----
    z2 = jnp.dot(a1.astype(w2_ref.dtype), w2_ref[...],
                 preferred_element_type=jnp.float32)
    m2 = jnp.mean(z2, axis=0, keepdims=True)
    v2 = jnp.mean(z2 * z2, axis=0, keepdims=True) - m2 * m2
    scale2 = g2 * jax.lax.rsqrt(v2 + BN_EPS)
    shift2 = be2 - m2 * scale2
    o_ref[...] = _sigmoid(z2 * scale2 + shift2).astype(o_ref.dtype)


def _vmem_limit_bytes(b, f_in_p, n_h_p, f_out_p):
    """Budget derived from actual buffers (double-buffered I/O + f32 temps)."""
    in_bytes = (b * f_in_p * 2            # x (bf16)
                + f_in_p * n_h_p * 2      # w1 (bf16)
                + n_h_p * f_out_p * 2     # w2 (bf16)
                + 8 * LANE * 4)           # packed BN params (padded tile)
    out_bytes = b * f_out_p * 4
    interm = 4 * b * max(n_h_p, f_out_p) * 4   # z1, a1, z2, fused temps
    return int(2 * (in_bytes + out_bytes) + interm + (4 << 20))


@functools.partial(jax.jit, static_argnames=("n_in", "n_out"))
def sae_forward(x, packed_params, *, n_in=N_IN, n_out=N_OUT):
    """x: (B, 1, n_in, n_in) NCHW float32. Returns (B, n_out*n_out) float32."""
    w1p, w2p, bnp = packed_params
    b = x.shape[0]
    f_in = n_in * n_in
    f_out = n_out * n_out
    f_in_p, n_h_p = w1p.shape
    f_out_p = w2p.shape[1]

    # Flatten (like x.view(-1, n_in*n_in)), cast to bf16, zero-pad to 128 lanes.
    x2d = x.reshape(b, f_in).astype(jnp.bfloat16)
    x2d = jnp.pad(x2d, ((0, 0), (0, f_in_p - f_in)))

    full = lambda shape: pl.BlockSpec(shape, lambda: (0,) * len(shape))

    out_pad = pl.pallas_call(
        sae_kernel,
        out_shape=jax.ShapeDtypeStruct((b, f_out_p), jnp.float32),
        in_specs=[
            full((b, f_in_p)),
            full((f_in_p, n_h_p)),
            full((n_h_p, f_out_p)),
            full((4, LANE)),
        ],
        out_specs=full((b, f_out_p)),
        compiler_params=pltpu.CompilerParams(
            vmem_limit_bytes=_vmem_limit_bytes(b, f_in_p, n_h_p, f_out_p)),
    )(x2d, w1p, w2p, bnp)

    return out_pad[:, :f_out]


def init_params(key, n_in=N_IN, n_h=N_H, n_out=N_OUT):
    """PyTorch-default-shaped params.

    nn.Linear: U(-1/sqrt(fan_in), 1/sqrt(fan_in)) for weight and bias.
    nn.BatchNorm1d: gamma=1, beta=0.
    """
    f_in = n_in * n_in
    f_out = n_out * n_out
    k1, k2, k3, k4 = jax.random.split(key, 4)

    bound1 = 1.0 / jnp.sqrt(f_in)
    w1 = jax.random.uniform(k1, (n_h, f_in), jnp.float32, -bound1, bound1)
    b1 = jax.random.uniform(k2, (n_h,), jnp.float32, -bound1, bound1)

    bound2 = 1.0 / jnp.sqrt(n_h)
    w2 = jax.random.uniform(k3, (f_out, n_h), jnp.float32, -bound2, bound2)
    b2 = jax.random.uniform(k4, (f_out,), jnp.float32, -bound2, bound2)

    g1 = jnp.ones((n_h,), jnp.float32)
    be1 = jnp.zeros((n_h,), jnp.float32)
    g2 = jnp.ones((f_out,), jnp.float32)
    be2 = jnp.zeros((f_out,), jnp.float32)
    return w1, b1, g1, be1, w2, b2, g2, be2


def pack_params(params):
    """Pad/transpose/pack params for the kernel.

    - Linear biases are dropped (training-mode BN cancels them exactly).
    - Weights transposed for x @ W, zero-padded to 128-lane tiles, cast bf16.
      w2's padded K-rows are zero so padded a1 lanes (sigmoid(0)=0.5) vanish.
    - gamma/beta packed into one (4, LANE) f32 array (zero-padded lanes).
    """
    w1, _b1, g1, be1, w2, _b2, g2, be2 = params
    n_h, f_in = w1.shape
    f_out = w2.shape[0]
    f_in_p, n_h_p, f_out_p = _round_up(f_in), _round_up(n_h), _round_up(f_out)
    assert n_h_p <= LANE and f_out_p <= LANE

    w1p = jnp.zeros((f_in_p, n_h_p), jnp.bfloat16)
    w1p = w1p.at[:f_in, :n_h].set(w1.T.astype(jnp.bfloat16))
    w2p = jnp.zeros((n_h_p, f_out_p), jnp.bfloat16)
    w2p = w2p.at[:n_h, :f_out].set(w2.T.astype(jnp.bfloat16))

    bnp = jnp.zeros((4, LANE), jnp.float32)
    bnp = bnp.at[0, :n_h].set(g1).at[1, :n_h].set(be1)
    bnp = bnp.at[2, :f_out].set(g2).at[3, :f_out].set(be2)
    return w1p, w2p, bnp


def reference_forward(x, params, n_in=N_IN):
    """Pure-JAX reference with the original (bias-including) math, mirroring the
    kernel's bf16 storage of x / weights / a1 (all accumulation in f32)."""
    w1, b1, g1, be1, w2, b2, g2, be2 = params
    x2d = x.reshape(x.shape[0], n_in * n_in)
    xb = x2d.astype(jnp.bfloat16).astype(jnp.float32)
    w1b = w1.astype(jnp.bfloat16).astype(jnp.float32)
    w2b = w2.astype(jnp.bfloat16).astype(jnp.float32)

    z1 = xb @ w1b.T + b1
    z1 = (z1 - z1.mean(0, keepdims=True)) * jax.lax.rsqrt(
        z1.var(0, keepdims=True) + BN_EPS)
    a1 = jax.nn.sigmoid(z1 * g1 + be1)
    a1 = a1.astype(jnp.bfloat16).astype(jnp.float32)

    z2 = a1 @ w2b.T + b2
    z2 = (z2 - z2.mean(0, keepdims=True)) * jax.lax.rsqrt(
        z2.var(0, keepdims=True) + BN_EPS)
    return jax.nn.sigmoid(z2 * g2 + be2)


if __name__ == "__main__":
    key = jax.random.PRNGKey(0)
    k_param, k_x = jax.random.split(key)

    params = init_params(k_param)
    packed = pack_params(params)

    batch = 8
    x = jax.random.uniform(k_x, (batch, 1, N_IN, N_IN), jnp.float32)  # NCHW

    out = jax.block_until_ready(sae_forward(x, packed))

    ref = reference_forward(x, params)
    assert out.shape == (batch, N_OUT * N_OUT)
    assert jnp.allclose(out, ref, atol=5e-5, rtol=5e-5), \
        "mismatch vs pure-JAX reference"

    print("KERNEL_OK")
</pallas_src>

<mosaic_0001>
module attributes {stable_mosaic.version = 11 : i64} {
  func.func @sae_kernel(%arg0: memref<8x128xbf16, #tpu.memory_space<vmem>>, %arg1: memref<128x128xbf16, #tpu.memory_space<vmem>>, %arg2: memref<128x128xbf16, #tpu.memory_space<vmem>>, %arg3: memref<4x128xf32, #tpu.memory_space<vmem>>, %arg4: memref<8x128xf32, #tpu.memory_space<vmem>>) attributes {dimension_semantics = [], scalar_prefetch = 0 : i64, scratch_operands = 0 : i64, tpu.core_type = #tpu.core_type<tc>} {
    %c0 = arith.constant 0 : index
    %c0_0 = arith.constant 0 : index
    %0 = vector.load %arg0[%c0, %c0_0] : memref<8x128xbf16, #tpu.memory_space<vmem>>, vector<8x128xbf16>
    %c0_1 = arith.constant 0 : index
    %c0_2 = arith.constant 0 : index
    %1 = vector.load %arg3[%c0_1, %c0_2] : memref<4x128xf32, #tpu.memory_space<vmem>>, vector<1x128xf32>
    %c1 = arith.constant 1 : index
    %c0_3 = arith.constant 0 : index
    %2 = vector.load %arg3[%c1, %c0_3] : memref<4x128xf32, #tpu.memory_space<vmem>>, vector<1x128xf32>
    %c2 = arith.constant 2 : index
    %c0_4 = arith.constant 0 : index
    %3 = vector.load %arg3[%c2, %c0_4] : memref<4x128xf32, #tpu.memory_space<vmem>>, vector<1x128xf32>
    %c3 = arith.constant 3 : index
    %c0_5 = arith.constant 0 : index
    %4 = vector.load %arg3[%c3, %c0_5] : memref<4x128xf32, #tpu.memory_space<vmem>>, vector<1x128xf32>
    %c0_6 = arith.constant 0 : index
    %c0_7 = arith.constant 0 : index
    %5 = vector.load %arg1[%c0_6, %c0_7] : memref<128x128xbf16, #tpu.memory_space<vmem>>, vector<128x128xbf16>
    %cst = arith.constant dense<0.000000e+00> : vector<8x128xf32>
    %6 = tpu.matmul %0, %5, %cst {dimension_numbers = #tpu.dot_dimension_numbers<[1], [0], [0], [1], [0, 0, 1, 1], [], []>} : vector<8x128xbf16>, vector<128x128xbf16>, vector<8x128xf32> -> vector<8x128xf32>
    %cst_8 = arith.constant dense<0.000000e+00> : vector<128xf32>
    %7 = vector.multi_reduction <add>, %6, %cst_8 [0] : vector<8x128xf32> to vector<128xf32>
    %8 = vector.shape_cast %7 : vector<128xf32> to vector<1x128xf32>
    %cst_9 = arith.constant 8.000000e+00 : f32
    %9 = vector.broadcast %cst_9 : f32 to vector<1x128xf32>
    %10 = arith.divf %8, %9 : vector<1x128xf32>
    %11 = arith.mulf %6, %6 : vector<8x128xf32>
    %cst_10 = arith.constant dense<0.000000e+00> : vector<128xf32>
    %12 = vector.multi_reduction <add>, %11, %cst_10 [0] : vector<8x128xf32> to vector<128xf32>
    %13 = vector.shape_cast %12 : vector<128xf32> to vector<1x128xf32>
    %cst_11 = arith.constant 8.000000e+00 : f32
    %14 = vector.broadcast %cst_11 : f32 to vector<1x128xf32>
    %15 = arith.divf %13, %14 : vector<1x128xf32>
    %16 = arith.mulf %10, %10 : vector<1x128xf32>
    %17 = arith.subf %15, %16 : vector<1x128xf32>
    %cst_12 = arith.constant 9.99999974E-6 : f32
    %18 = vector.broadcast %cst_12 : f32 to vector<1x128xf32>
    %19 = arith.addf %17, %18 : vector<1x128xf32>
    %20 = math.rsqrt %19 : vector<1x128xf32>
    %21 = arith.mulf %1, %20 : vector<1x128xf32>
    %22 = arith.mulf %10, %21 : vector<1x128xf32>
    %23 = arith.subf %2, %22 : vector<1x128xf32>
    %24 = vector.broadcast %21 : vector<1x128xf32> to vector<8x128xf32>
    %25 = arith.mulf %6, %24 : vector<8x128xf32>
    %26 = vector.broadcast %23 : vector<1x128xf32> to vector<8x128xf32>
    %27 = arith.addf %25, %26 : vector<8x128xf32>
    %cst_13 = arith.constant 0.000000e+00 : f32
    %28 = vector.broadcast %cst_13 : f32 to vector<8x128xf32>
    %29 = arith.subf %28, %27 : vector<8x128xf32>
    %30 = math.exp %29 : vector<8x128xf32>
    %cst_14 = arith.constant 1.000000e+00 : f32
    %31 = vector.broadcast %cst_14 : f32 to vector<8x128xf32>
    %32 = arith.addf %31, %30 : vector<8x128xf32>
    %cst_15 = arith.constant 1.000000e+00 : f32
    %33 = vector.broadcast %cst_15 : f32 to vector<8x128xf32>
    %34 = arith.divf %33, %32 : vector<8x128xf32>
    %35 = arith.truncf %34 : vector<8x128xf32> to vector<8x128xbf16>
    %c0_16 = arith.constant 0 : index
    %c0_17 = arith.constant 0 : index
    %36 = vector.load %arg2[%c0_16, %c0_17] : memref<128x128xbf16, #tpu.memory_space<vmem>>, vector<128x128xbf16>
    %cst_18 = arith.constant dense<0.000000e+00> : vector<8x128xf32>
    %37 = tpu.matmul %35, %36, %cst_18 {dimension_numbers = #tpu.dot_dimension_numbers<[1], [0], [0], [1], [0, 0, 1, 1], [], []>} : vector<8x128xbf16>, vector<128x128xbf16>, vector<8x128xf32> -> vector<8x128xf32>
    %cst_19 = arith.constant dense<0.000000e+00> : vector<128xf32>
    %38 = vector.multi_reduction <add>, %37, %cst_19 [0] : vector<8x128xf32> to vector<128xf32>
    %39 = vector.shape_cast %38 : vector<128xf32> to vector<1x128xf32>
    %cst_20 = arith.constant 8.000000e+00 : f32
    %40 = vector.broadcast %cst_20 : f32 to vector<1x128xf32>
    %41 = arith.divf %39, %40 : vector<1x128xf32>
    %42 = arith.mulf %37, %37 : vector<8x128xf32>
    %cst_21 = arith.constant dense<0.000000e+00> : vector<128xf32>
    %43 = vector.multi_reduction <add>, %42, %cst_21 [0] : vector<8x128xf32> to vector<128xf32>
    %44 = vector.shape_cast %43 : vector<128xf32> to vector<1x128xf32>
    %cst_22 = arith.constant 8.000000e+00 : f32
    %45 = vector.broadcast %cst_22 : f32 to vector<1x128xf32>
    %46 = arith.divf %44, %45 : vector<1x128xf32>
    %47 = arith.mulf %41, %41 : vector<1x128xf32>
    %48 = arith.subf %46, %47 : vector<1x128xf32>
    %cst_23 = arith.constant 9.99999974E-6 : f32
    %49 = vector.broadcast %cst_23 : f32 to vector<1x128xf32>
    %50 = arith.addf %48, %49 : vector<1x128xf32>
    %51 = math.rsqrt %50 : vector<1x128xf32>
    %52 = arith.mulf %3, %51 : vector<1x128xf32>
    %53 = arith.mulf %41, %52 : vector<1x128xf32>
    %54 = arith.subf %4, %53 : vector<1x128xf32>
    %55 = vector.broadcast %52 : vector<1x128xf32> to vector<8x128xf32>
    %56 = arith.mulf %37, %55 : vector<8x128xf32>
    %57 = vector.broadcast %54 : vector<1x128xf32> to vector<8x128xf32>
    %58 = arith.addf %56, %57 : vector<8x128xf32>
    %cst_24 = arith.constant 0.000000e+00 : f32
    %59 = vector.broadcast %cst_24 : f32 to vector<8x128xf32>
    %60 = arith.subf %59, %58 : vector<8x128xf32>
    %61 = math.exp %60 : vector<8x128xf32>
    %cst_25 = arith.constant 1.000000e+00 : f32
    %62 = vector.broadcast %cst_25 : f32 to vector<8x128xf32>
    %63 = arith.addf %62, %61 : vector<8x128xf32>
    %cst_26 = arith.constant 1.000000e+00 : f32
    %64 = vector.broadcast %cst_26 : f32 to vector<8x128xf32>
    %65 = arith.divf %64, %63 : vector<8x128xf32>
    %c0_27 = arith.constant 0 : index
    %c0_28 = arith.constant 0 : index
    %66 = vector.load %arg4[%c0_27, %c0_28] : memref<8x128xf32, #tpu.memory_space<vmem>>, vector<8x128xf32>
    tpu.vector_store %arg4[%c0_27, %c0_28], %65 {strides = array<i32>} : memref<8x128xf32, #tpu.memory_space<vmem>>, vector<8x128xf32>,
    return
  }
}

</mosaic_0001>

<llo_original>
// kernel: sae_forward.1
$region0: #{sae_forward.1}
  #allocation0 [shape = 'u32[]', space=smem, size = 0x4, offset = 0x4, fixed_abs, tag = 'smem constant byte address 0x4 - core index']
  #allocation1 [shape = 'u32[72,128]{1,0:T(1,128)}', space=vmem, size = 0x9000, scoped, tag = 'internal scratch']
  %s0 = inlined_call_operand.vmem [shape: bf16[8,128], index: 0, kind: input, shape index: {}]
  %s1 = inlined_call_operand.vmem [shape: bf16[128,128], index: 1, kind: input, shape index: {}]
  %s2 = inlined_call_operand.vmem [shape: bf16[128,128], index: 2, kind: input, shape index: {}]
  %s3 = inlined_call_operand.vmem [shape: f32[4,128], index: 3, kind: input, shape index: {}]
  %s4 = inlined_call_operand.hbm [shape: f32[8,128], index: 4, kind: output, shape index: {}]
  %s5 = sld [smem:[#allocation0]]
  $region26: #{sae_forward.1} parent=0
    _
  %s7 = ssub.s32 1, %s5
  %s8 = scalar_select 0, %s7, %s5
  $region1: #{sae_forward.1} parent=0
    #allocation2 [shape = 'u8[4096]{0}', space=vmem, size = 0x1000, scoped, tag = 'output window, operand 0, single buffered']
    #allocation3 [shape = 's32[1]{0}', space=sflag, size = 0x4, scoped, tag = 'scoped memory for sae_forward.1']
    %9 = vsyncpa [#allocation3], 0
    // Predicated region
    $region2: #{sae_forward.1} parent=1 // pred_check
      _
    $region3: #{sae_forward.1} parent=1 // pred_check_branch
      %11 = sbr.rel (0) target = $region5
    $region4: #{sae_forward.1} parent=1 // pred_region
      _
    $region5: #{sae_forward.1} parent=1 // pred_fallthru
      _
    // Predicated region
    $region6: #{sae_forward.1} parent=1 // pred_check
      _
    $region7: #{sae_forward.1} parent=1 // pred_check_branch
      %13 = sbr.rel (0) target = $region9
    $region8: #{sae_forward.1} parent=1 // pred_region
      _
    $region9: #{sae_forward.1} parent=1 // pred_fallthru
      _
    // Predicated region
    $region10: #{sae_forward.1} parent=1 // pred_check
      _
    $region11: #{sae_forward.1} parent=1 // pred_check_branch
      %15 = sbr.rel (0) target = $region13
    $region12: #{sae_forward.1} parent=1 // pred_region
      _
    $region13: #{sae_forward.1} parent=1 // pred_fallthru
      _
    // Predicated region
    $region14: #{sae_forward.1} parent=1 // pred_check
      _
    $region15: #{sae_forward.1} parent=1 // pred_check_branch
      %17 = sbr.rel (0) target = $region17
    $region16: #{sae_forward.1} parent=1 // pred_region
      _
    $region17: #{sae_forward.1} parent=1 // pred_fallthru
      _
    %v18 = vld [vmem:[%s0] sm:$0xf]
    %v19 = vld [vmem:[%s3] sm:$0x1]
    %v20 = vld [vmem:[%s3 + $0x1] sm:$0x1]
    %v21 = vld [vmem:[%s3 + $0x2] sm:$0x1]
    %v22 = vld [vmem:[%s3 + $0x3] sm:$0x1]
    %v23 = vld [vmem:[%s1] sm:$0xf]
    %v24 = vld [vmem:[%s1 + $0x4] sm:$0xf]
    %v25 = vld [vmem:[%s1 + $0x8] sm:$0xf]
    %v26 = vld [vmem:[%s1 + $0xc] sm:$0xf]
    %v27 = vld [vmem:[%s1 + $0x10] sm:$0xf]
    %v28 = vld [vmem:[%s1 + $0x14] sm:$0xf]
    %v29 = vld [vmem:[%s1 + $0x18] sm:$0xf]
    %v30 = vld [vmem:[%s1 + $0x1c] sm:$0xf]
    %v31 = vld [vmem:[%s1 + $0x20] sm:$0xf]
    %v32 = vld [vmem:[%s1 + $0x24] sm:$0xf]
    %v33 = vld [vmem:[%s1 + $0x28] sm:$0xf]
    %v34 = vld [vmem:[%s1 + $0x2c] sm:$0xf]
    %v35 = vld [vmem:[%s1 + $0x30] sm:$0xf]
    %v36 = vld [vmem:[%s1 + $0x34] sm:$0xf]
    %v37 = vld [vmem:[%s1 + $0x38] sm:$0xf]
    %v38 = vld [vmem:[%s1 + $0x3c] sm:$0xf]
    %v55 = vunpack.c.l.b16 %v23
    %v56 = vunpack.c.l.b16 %v24
    %v57 = vunpack.c.l.b16 %v25
    %v58 = vunpack.c.l.b16 %v26
    %v59 = vunpack.c.l.b16 %v27
    %v60 = vunpack.c.l.b16 %v28
    %v61 = vunpack.c.l.b16 %v29
    %v62 = vunpack.c.l.b16 %v30
    %v63 = vunpack.c.l.b16 %v31
    %v64 = vunpack.c.l.b16 %v32
    %v65 = vunpack.c.l.b16 %v33
    %v66 = vunpack.c.l.b16 %v34
    %v67 = vunpack.c.l.b16 %v35
    %v68 = vunpack.c.l.b16 %v36
    %v69 = vunpack.c.l.b16 %v37
    %v70 = vunpack.c.l.b16 %v38
    %v71 = vpack.c.b16 %v56, %v55
    %v72 = vpack.c.b16 %v58, %v57
    %v73 = vpack.c.b16 %v60, %v59
    %v74 = vpack.c.b16 %v62, %v61
    %v75 = vpack.c.b16 %v64, %v63
    %v76 = vpack.c.b16 %v66, %v65
    %v77 = vpack.c.b16 %v68, %v67
    %v78 = vpack.c.b16 %v70, %v69
    %87 = vmatpush.bf16.msra.mxu0 %v78
    %88 = vmatpush.bf16.msra.mxu0 %v77
    %89 = vmatpush.bf16.msra.mxu0 %v76
    %90 = vmatpush.bf16.msra.mxu0 %v75
    %91 = vmatpush.bf16.msra.mxu0 %v74
    %92 = vmatpush.bf16.msra.mxu0 %v73
    %93 = vmatpush.bf16.msra.mxu0 %v72
    %94 = vmatpush.bf16.msra.mxu0 %v71
    %95 = vmatmul.bf16.gmra.mxu0 %v18
    %v96 = vpop.f32.mrf.mxu0
    %v97 = vadd.f32 0.0, %v96
    %v98 = vpop.f32.mrf.mxu0
    %99 = vdwg.mxu0
    %v100 = vrot.slane %v97, 4
    %v101 = vadd.f32 %v97, %v100
    %v102 = vrot.slane %v101, 2
    %v103 = vadd.f32 %v101, %v102
    %v104 = vrot.slane %v103, 1
    %v105 = vadd.f32 %v103, %v104
    %v106 = vrcp.pop 8.0
    %v107 = vmul.f32 8.0, %v106
    %v108 = vsub.f32 1.0, %v107
    %v109 = vmul.f32 %v106, %v108
    %v110 = vadd.f32 %v106, %v109
    %vm111 = vweird.f32 %v106
    %v112 = vsel %vm111, %v106, %v110
    %v113 = vmul.f32 %v105, %v112
    %v114 = vmul.f32 %v97, %v97
    %v115 = vrot.slane %v114, 4
    %v116 = vadd.f32 %v114, %v115
    %v117 = vrot.slane %v116, 2
    %v118 = vadd.f32 %v116, %v117
    %v119 = vrot.slane %v118, 1
    %v120 = vadd.f32 %v118, %v119
    %v121 = vmul.f32 %v120, %v112
    %v122 = vmul.f32 %v113, %v113
    %v123 = vsub.f32 %v121, %v122
    %v124 = vadd.f32 %v123, 1e-05
    %v125 = vrsqrt.pop %v124
    %v126 = vmul.f32 %v125, %v124
    %v127 = vmul.f32 %v126, %v125
    %v128 = vmul.f32 0.5, %v127
    %v129 = vsub.f32 1.5, %v128
    %v130 = vmul.f32 %v125, %v129
    %vm131 = vweird.f32 %v124
    %vm132 = vweird.f32 %v125
    %vm133 = vmor %vm131, %vm132
    %v134 = vsel %vm133, %v125, %v130
    %v135 = vmul.f32 %v19, %v134
    %v136 = vmul.f32 %v113, %v135
    %v137 = vsub.f32 %v20, %v136
    %v138 = vperm.slane %v135, 0
    %v139 = vmul.f32 %v97, %v138
    %v140 = vperm.slane %v137, 0
    %v141 = vadd.f32 %v139, %v140
    %v142 = vsub.f32 0.0, %v141
    %v143 = vmul.f32 %v142, 1.442695
    %v144 = vpow.pop %v143
    %v145 = vadd.f32 %v144, 1.0
    %v146 = vrcp.pop %v145
    %v147 = vmul.f32 %v145, %v146
    %v148 = vsub.f32 1.0, %v147
    %v149 = vmul.f32 %v146, %v148
    %v150 = vadd.f32 %v146, %v149
    %vm151 = vweird.f32 %v145
    %vm152 = vweird.f32 %v146
    %vm153 = vmor %vm151, %vm152
    %v154 = vsel %vm153, %v146, %v150
    %v155 = vand.u32 2147483647, %v145
    %vm156 = vcmp.eq.f32.partialorder %v155, 8.507059e+37
    %v157 = vand.u32 %v145, 2147483648
    %v158 = vor.u32 1.1754944e-38, %v157
    %v159 = vsel %vm156, %v158, %v154
    %v160 = vmul.f32 1.0, %v159
    %v161 = vpack.c.bf16 %v160, %v160
    %v162 = vld [vmem:[%s2] sm:$0xf]
    %v163 = vld [vmem:[%s2 + $0x4] sm:$0xf]
    %v164 = vld [vmem:[%s2 + $0x8] sm:$0xf]
    %v165 = vld [vmem:[%s2 + $0xc] sm:$0xf]
    %v166 = vld [vmem:[%s2 + $0x10] sm:$0xf]
    %v167 = vld [vmem:[%s2 + $0x14] sm:$0xf]
    %v168 = vld [vmem:[%s2 + $0x18] sm:$0xf]
    %v169 = vld [vmem:[%s2 + $0x1c] sm:$0xf]
    %v170 = vld [vmem:[%s2 + $0x20] sm:$0xf]
    %v171 = vld [vmem:[%s2 + $0x24] sm:$0xf]
    %v172 = vld [vmem:[%s2 + $0x28] sm:$0xf]
    %v173 = vld [vmem:[%s2 + $0x2c] sm:$0xf]
    %v174 = vld [vmem:[%s2 + $0x30] sm:$0xf]
    %v175 = vld [vmem:[%s2 + $0x34] sm:$0xf]
    %v176 = vld [vmem:[%s2 + $0x38] sm:$0xf]
    %v177 = vld [vmem:[%s2 + $0x3c] sm:$0xf]
    %v194 = vunpack.c.l.b16 %v162
    %v195 = vunpack.c.l.b16 %v163
    %v196 = vunpack.c.l.b16 %v164
    %v197 = vunpack.c.l.b16 %v165
    %v198 = vunpack.c.l.b16 %v166
    %v199 = vunpack.c.l.b16 %v167
    %v200 = vunpack.c.l.b16 %v168
    %v201 = vunpack.c.l.b16 %v169
    %v202 = vunpack.c.l.b16 %v170
    %v203 = vunpack.c.l.b16 %v171
    %v204 = vunpack.c.l.b16 %v172
    %v205 = vunpack.c.l.b16 %v173
    %v206 = vunpack.c.l.b16 %v174
    %v207 = vunpack.c.l.b16 %v175
    %v208 = vunpack.c.l.b16 %v176
    %v209 = vunpack.c.l.b16 %v177
    %v210 = vpack.c.b16 %v195, %v194
    %v211 = vpack.c.b16 %v197, %v196
    %v212 = vpack.c.b16 %v199, %v198
    %v213 = vpack.c.b16 %v201, %v200
    %v214 = vpack.c.b16 %v203, %v202
    %v215 = vpack.c.b16 %v205, %v204
    %v216 = vpack.c.b16 %v207, %v206
    %v217 = vpack.c.b16 %v209, %v208
    %226 = vmatpush.bf16.msra.mxu0 %v217
    %227 = vmatpush.bf16.msra.mxu0 %v216
    %228 = vmatpush.bf16.msra.mxu0 %v215
    %229 = vmatpush.bf16.msra.mxu0 %v214
    %230 = vmatpush.bf16.msra.mxu0 %v213
    %231 = vmatpush.bf16.msra.mxu0 %v212
    %232 = vmatpush.bf16.msra.mxu0 %v211
    %233 = vmatpush.bf16.msra.mxu0 %v210
    %234 = vmatmul.bf16.gmra.mxu0 %v161
    %v235 = vpop.f32.mrf.mxu0
    %v236 = vadd.f32 0.0, %v235
    %v237 = vpop.f32.mrf.mxu0
    %238 = vdwg.mxu0
    %v239 = vrot.slane %v236, 4
    %v240 = vadd.f32 %v236, %v239
    %v241 = vrot.slane %v240, 2
    %v242 = vadd.f32 %v240, %v241
    %v243 = vrot.slane %v242, 1
    %v244 = vadd.f32 %v242, %v243
    %v245 = vmul.f32 %v244, %v112
    %v246 = vmul.f32 %v236, %v236
    %v247 = vrot.slane %v246, 4
    %v248 = vadd.f32 %v246, %v247
    %v249 = vrot.slane %v248, 2
    %v250 = vadd.f32 %v248, %v249
    %v251 = vrot.slane %v250, 1
    %v252 = vadd.f32 %v250, %v251
    %v253 = vmul.f32 %v252, %v112
    %v254 = vmul.f32 %v245, %v245
    %v255 = vsub.f32 %v253, %v254
    %v256 = vadd.f32 %v255, 1e-05
    %v257 = vrsqrt.pop %v256
    %v258 = vmul.f32 %v257, %v256
    %v259 = vmul.f32 %v258, %v257
    %v260 = vmul.f32 0.5, %v259
    %v261 = vsub.f32 1.5, %v260
    %v262 = vmul.f32 %v257, %v261
    %vm263 = vweird.f32 %v256
    %vm264 = vweird.f32 %v257
    %vm265 = vmor %vm263, %vm264
    %v266 = vsel %vm265, %v257, %v262
    %v267 = vmul.f32 %v21, %v266
    %v268 = vmul.f32 %v245, %v267
    %v269 = vsub.f32 %v22, %v268
    %v270 = vperm.slane %v267, 0
    %v271 = vmul.f32 %v236, %v270
    %v272 = vperm.slane %v269, 0
    %v273 = vadd.f32 %v271, %v272
    %v274 = vsub.f32 0.0, %v273
    %v275 = vmul.f32 %v274, 1.442695
    %v276 = vpow.pop %v275
    %v277 = vadd.f32 %v276, 1.0
    %v278 = vrcp.pop %v277
    %v279 = vmul.f32 %v277, %v278
    %v280 = vsub.f32 1.0, %v279
    %v281 = vmul.f32 %v278, %v280
    %v282 = vadd.f32 %v278, %v281
    %vm283 = vweird.f32 %v277
    %vm284 = vweird.f32 %v278
    %vm285 = vmor %vm283, %vm284
    %v286 = vsel %vm285, %v278, %v282
    %v287 = vand.u32 2147483647, %v277
    %vm288 = vcmp.eq.f32.partialorder %v287, 8.507059e+37
    %v289 = vand.u32 %v277, 2147483648
    %v290 = vor.u32 1.1754944e-38, %v289
    %v291 = vsel %vm288, %v290, %v286
    %v292 = vmul.f32 1.0, %v291
    %293 = vst [vmem:[#allocation2] sm:$0xff] %v292
    // Predicated region
    $region18: #{sae_forward.1} parent=1 // pred_check
      _
    $region19: #{sae_forward.1} parent=1 // pred_check_branch
      %295 = sbr.rel (0) target = $region21
    $region20: #{sae_forward.1} parent=1 // pred_region
      %297 = vsyncadd [#allocation3], 0
      %s299 = sshll.u32 [#allocation2], 4
      %s300 = int_to_ptr.vmem [resolvable:$true] %s299
      %s301 = sshll.u32 %s4, 4
      %s302 = int_to_ptr.hbm [resolvable:$true] %s301
      %304 = dma.vmem_to_hbm [thread:$0]  %s300, 128, %s302, [#allocation3]
    $region21: #{sae_forward.1} parent=1 // pred_fallthru
      _
    // Predicated region
    $region22: #{sae_forward.1} parent=1 // pred_check
      _
    $region23: #{sae_forward.1} parent=1 // pred_check_branch
      %306 = sbr.rel (0) target = $region25
    $region24: #{sae_forward.1} parent=1 // pred_region
      %308 = dma.done [#allocation3], 128
    $region25: #{sae_forward.1} parent=1 // pred_fallthru
      _
    %309 = vsyncpa [#allocation3], 1

</llo_original>
